<compile_context>
chip_gen: v7x
topology: tpu7x:2x2x1
jax: 0.10.0
libtpu: 0.0.40
codegen_flags: <defaults>
</compile_context>

<pallas_src>
import jax
import jax.numpy as jnp
from jax.experimental import pallas as pl
from jax.experimental.pallas import tpu as pltpu


def mynet_kernel(p_ref, x_ref, o_ref):
    # p_ref: SMEM scalar (shape (1,)); x_ref/o_ref: VMEM tiles (tile_rows, TN)
    p = p_ref[0]
    x = x_ref[...]
    # (x*p + x + p) ** 0.5  ==  sqrt(x*(p+1) + p)   (single EUP sqrt)
    y = jnp.sqrt(x * (p + 1.0) + p)
    # (y + x) ** 0.1  -- no cheaper lowering than exp(0.1*log(.))
    o_ref[...] = (y + x) ** 0.1


def mynet_forward(x_nchw, p, *, lane_width=1024, target_block_bytes=1 << 20):
    """x_nchw: (B, C, H, W) float; p: (1,) float scalar parameter."""
    orig_shape = x_nchw.shape
    total = x_nchw.size
    dtype = x_nchw.dtype
    itemsize = jnp.dtype(dtype).itemsize

    # ---- choose a lane-dense 2D slab layout -------------------------------
    rows = -(-total // lane_width)                      # ceil
    bytes_per_row = lane_width * itemsize
    tile_rows = max(1, min(rows, target_block_bytes // bytes_per_row))
    if tile_rows < rows:
        # Block does not cover the full row extent -> sublane dim must be a
        # multiple of 8; pad rows up to a multiple of tile_rows.
        tile_rows = max(8, (tile_rows // 8) * 8)
        rows_padded = -(-rows // tile_rows) * tile_rows
    else:
        # Single block covering the full array: any row count is allowed.
        rows_padded = rows

    padded_total = rows_padded * lane_width
    flat = x_nchw.reshape(-1)
    if padded_total != total:
        flat = jnp.pad(flat, (0, padded_total - total))
    x2d = flat.reshape(rows_padded, lane_width)

    grid = (rows_padded // tile_rows,)

    out2d = pl.pallas_call(
        mynet_kernel,
        out_shape=jax.ShapeDtypeStruct((rows_padded, lane_width), dtype),
        grid=grid,
        in_specs=[
            pl.BlockSpec(memory_space=pltpu.SMEM),                     # p
            pl.BlockSpec((tile_rows, lane_width), lambda i: (i, 0)),   # x tile
        ],
        out_specs=pl.BlockSpec((tile_rows, lane_width), lambda i: (i, 0)),
        input_output_aliases={1: 0},  # reuse x2d's buffer for the output
        compiler_params=pltpu.CompilerParams(
            dimension_semantics=("parallel",),
        ),
    )(p, x2d)

    return out2d.reshape(-1)[:total].reshape(orig_shape)


if __name__ == "__main__":
    key = jax.random.PRNGKey(0)
    B, C, H, W = 2, 4, 16, 16

    # Non-negative inputs so the sqrt / **0.1 paths stay real-valued,
    # matching what the PyTorch forward needs to avoid NaNs.
    x = jax.random.uniform(key, (B, C, H, W), dtype=jnp.float32)

    # Parameter init exactly as in MyNeT.__init__: torch.zeros(1)
    p = jnp.zeros((1,), dtype=jnp.float32)

    y = mynet_forward(x, p)
    y = jax.block_until_ready(y)

    # Pure-JAX reference check (original formulation with ** 0.5)
    y_ref = ((x * p[0] + x + p[0]) ** 0.5 + x) ** 0.1
    assert jnp.allclose(y, y_ref, atol=1e-5, rtol=1e-5), "mismatch vs reference"
    assert y.shape == x.shape

    print("KERNEL_OK")
</pallas_src>

<mosaic_0001>
module attributes {stable_mosaic.version = 11 : i64} {
  func.func @mynet_kernel(%arg0: i32, %arg1: memref<1xf32, #tpu.memory_space<smem>>, %arg2: memref<2x1024xf32, #tpu.memory_space<vmem>>, %arg3: memref<2x1024xf32, #tpu.memory_space<vmem>>) attributes {dimension_semantics = [#tpu.dimension_semantics<parallel>], iteration_bounds = array<i64: 1>, scalar_prefetch = 0 : i64, scratch_operands = 0 : i64, tpu.core_type = #tpu.core_type<tc>, window_params = [{transform_indices = @transform_0, window_bounds = array<i64: 1>}, {transform_indices = @transform_1, window_bounds = array<i64: 2, 1024>}, {transform_indices = @transform_2, window_bounds = array<i64: 2, 1024>}]} {
    %c0 = arith.constant 0 : index
    %0 = memref.load %arg1[%c0] : memref<1xf32, #tpu.memory_space<smem>>
    %c0_0 = arith.constant 0 : index
    %c0_1 = arith.constant 0 : index
    %1 = vector.load %arg2[%c0_0, %c0_1] : memref<2x1024xf32, #tpu.memory_space<vmem>>, vector<2x1024xf32>
    %cst = arith.constant 1.000000e+00 : f32
    %2 = arith.addf %0, %cst : f32
    %3 = vector.broadcast %2 : f32 to vector<2x1024xf32>
    %4 = arith.mulf %1, %3 : vector<2x1024xf32>
    %5 = vector.broadcast %0 : f32 to vector<2x1024xf32>
    %6 = arith.addf %4, %5 : vector<2x1024xf32>
    %7 = math.sqrt %6 : vector<2x1024xf32>
    %8 = arith.addf %7, %1 : vector<2x1024xf32>
    %cst_2 = arith.constant 1.000000e-01 : f32
    %9 = vector.broadcast %cst_2 : f32 to vector<2x1024xf32>
    %10 = math.powf %8, %9 : vector<2x1024xf32>
    %c0_3 = arith.constant 0 : index
    %c0_4 = arith.constant 0 : index
    %11 = vector.load %arg3[%c0_3, %c0_4] : memref<2x1024xf32, #tpu.memory_space<vmem>>, vector<2x1024xf32>
    tpu.vector_store %arg3[%c0_3, %c0_4], %10 {strides = array<i32>} : memref<2x1024xf32, #tpu.memory_space<vmem>>, vector<2x1024xf32>,
    return
  }
  func.func @transform_0(%arg0: i32) -> i32 {
    %c0_i32 = arith.constant 0 : i32
    %c0_i32_0 = arith.constant 0 : i32
    return %c0_i32 : i32
  }
  func.func @transform_1(%arg0: i32) -> (i32, i32) {
    %c0_i32 = arith.constant 0 : i32
    %c0_i32_0 = arith.constant 0 : i32
    return %arg0, %c0_i32 : i32, i32
  }
  func.func @transform_2(%arg0: i32) -> (i32, i32) {
    %c0_i32 = arith.constant 0 : i32
    %c0_i32_0 = arith.constant 0 : i32
    return %arg0, %c0_i32 : i32, i32
  }
}

</mosaic_0001>

<llo_original>
// kernel: tpu_custom_call.1
$region0: #{tpu_custom_call.1}
  #allocation0 [shape = 'u32[]', space=smem, size = 0x4, offset = 0x4, fixed_abs, tag = 'smem constant byte address 0x4 - core index']
  #allocation1 [shape = 'u32[144,128]{1,0:T(1,128)}', space=vmem, size = 0x12000, scoped, tag = 'internal scratch']
  #allocation2 [shape = 'f32[1]{0:T(128)S(6)}', space=smem, size = 0x200, scoped, tag = 'scoped memory for tpu_custom_call.1']
  %s0 = inlined_call_operand.<no memory space> [shape: f32[1], index: 0, kind: input, shape index: {}]
  %s1 = inlined_call_operand.hbm [shape: f32[2,1024], index: 1, kind: input, shape index: {}, may-alias: {1,2}]
  %s2 = inlined_call_operand.hbm [shape: f32[2,1024], index: 2, kind: output, shape index: {}, may-alias: {1,2}]
  %s3 = sld [smem:[#allocation0]]
  $region22: #{tpu_custom_call.1} parent=0
    _
  %s5 = ssub.s32 1, %s3
  %s6 = scalar_select 0, %s5, %s3
  %7 = sst [smem:[#allocation2]] %s0
  $region1: #{tpu_custom_call.1} parent=0
    #allocation3 [shape = 'u8[8192]{0}', space=vmem, size = 0x2000, scoped, tag = 'input window, operand 1, single buffered']
    #allocation4 [shape = 's32[1]{0}', space=sflag, size = 0x4, scoped, tag = 'scoped memory for tpu_custom_call.1']
    #allocation5 [shape = 's32[1]{0}', space=sflag, size = 0x4, scoped, tag = 'scoped memory for tpu_custom_call.1']
    #allocation6 [shape = 'u8[8192]{0}', space=vmem, size = 0x2000, scoped, tag = 'output window, operand 0, single buffered']
    %8 = vsyncpa [#allocation4], 0
    %9 = vsyncpa [#allocation5], 0
    // Predicated region
    $region2: #{tpu_custom_call.1} parent=1 // pred_check
      _
    $region3: #{tpu_custom_call.1} parent=1 // pred_check_branch
      %11 = sbr.rel (0) target = $region5
    $region4: #{tpu_custom_call.1} parent=1 // pred_region
      _
    $region5: #{tpu_custom_call.1} parent=1 // pred_fallthru
      _
    // Predicated region
    $region6: #{tpu_custom_call.1} parent=1 // pred_check
      _
    $region7: #{tpu_custom_call.1} parent=1 // pred_check_branch
      %13 = sbr.rel (0) target = $region9
    $region8: #{tpu_custom_call.1} parent=1 // pred_region
      %s15 = ssub.s32 256, 256
      %16 = vsyncadd [#allocation4], %s15
      %s18 = sshll.u32 [#allocation3], 4
      %s19 = int_to_ptr.vmem [resolvable:$true] %s18
      %21 = dma.hbm_to_vmem [thread:$0]  %s1, 256, %s19, [#allocation4]
    $region9: #{tpu_custom_call.1} parent=1 // pred_fallthru
      _
    // Predicated region
    $region10: #{tpu_custom_call.1} parent=1 // pred_check
      _
    $region11: #{tpu_custom_call.1} parent=1 // pred_check_branch
      %23 = sbr.rel (0) target = $region13
    $region12: #{tpu_custom_call.1} parent=1 // pred_region
      %24 = dma.done [#allocation4], 256
    $region13: #{tpu_custom_call.1} parent=1 // pred_fallthru
      _
    %s25 = sld [smem:[#allocation2]]
    %v26 = vld [vmem:[#allocation3] sm:$0xff]
    %v27 = vld [vmem:[#allocation3 + $0x8] sm:$0xff]
    %s28 = sadd.f32 %s25, 1.0
    %v29 = vstv %s28
    %v30 = vmul.f32 %v26, %v29
    %v31 = vmul.f32 %v27, %v29
    %v32 = vstv %s25
    %v33 = vadd.f32 %v30, %v32
    %v34 = vadd.f32 %v31, %v32
    %v35 = vrsqrt.pop %v33
    %v36 = vmul.f32 %v33, %v35
    %vm37 = vcmp.eq.f32.partialorder %v33, inf
    %v38 = vsel %vm37, %v33, %v36
    %vm39 = vcmp.eq.f32.partialorder %v33, 0.0
    %v40 = vand.u32 %v33, 2147483648
    %v41 = vsel %vm39, %v40, %v38
    %v42 = vrsqrt.pop %v34
    %v43 = vmul.f32 %v34, %v42
    %vm44 = vcmp.eq.f32.partialorder %v34, inf
    %v45 = vsel %vm44, %v34, %v43
    %vm46 = vcmp.eq.f32.partialorder %v34, 0.0
    %v47 = vand.u32 %v34, 2147483648
    %v48 = vsel %vm46, %v47, %v45
    %v49 = vadd.f32 %v41, %v26
    %v50 = vadd.f32 %v48, %v27
    %v51 = vpow.f32 %v49, 0.1
    %v52 = vpow.f32 %v50, 0.1
    %53 = vst [vmem:[#allocation6] sm:$0xff] %v51
    %54 = vst [vmem:[#allocation6 + $0x8] sm:$0xff] %v52
    // Predicated region
    $region14: #{tpu_custom_call.1} parent=1 // pred_check
      _
    $region15: #{tpu_custom_call.1} parent=1 // pred_check_branch
      %56 = sbr.rel (0) target = $region17
    $region16: #{tpu_custom_call.1} parent=1 // pred_region
      %s58 = ssub.s32 256, 256
      %59 = vsyncadd [#allocation5], %s58
      %s61 = sshll.u32 [#allocation6], 4
      %s62 = int_to_ptr.vmem [resolvable:$true] %s61
      %64 = dma.vmem_to_hbm [thread:$0]  %s62, 256, %s2, [#allocation5]
    $region17: #{tpu_custom_call.1} parent=1 // pred_fallthru
      _
    // Predicated region
    $region18: #{tpu_custom_call.1} parent=1 // pred_check
      _
    $region19: #{tpu_custom_call.1} parent=1 // pred_check_branch
      %66 = sbr.rel (0) target = $region21
    $region20: #{tpu_custom_call.1} parent=1 // pred_region
      %67 = dma.done [#allocation5], 256
    $region21: #{tpu_custom_call.1} parent=1 // pred_fallthru
      _
    %68 = vsyncpa [#allocation4], 1
    %69 = vsyncpa [#allocation5], 1

</llo_original>
